<compile_context>
chip_gen: v7x
topology: tpu7x:2x2x1
jax: 0.10.0
libtpu: 0.0.40
codegen_flags: <defaults>
</compile_context>

<pallas_src>
import functools

import jax
import jax.numpy as jnp
from jax import lax
from jax.experimental import pallas as pl
from jax.experimental.pallas import tpu as pltpu


# ----------------------------- Pallas kernel -------------------------------- #

def _mha_kernel(src_len,
                x1_ref, x2_ref,
                wq_ref, bq_ref, wk_ref, bk_ref, wv_ref, bv_ref, wp_ref,
                cos_ref, sin_ref,
                o_ref, acc_ref):
    """One (batch, head) pair per grid step; head axis accumulates into acc."""
    h = pl.program_id(1)
    n_h = pl.num_programs(1)

    @pl.when(h == 0)
    def _():
        acc_ref[...] = jnp.zeros_like(acc_ref)

    x1 = x1_ref[0]                                   # (T, C), native dtype
    x2 = x2_ref[0]                                   # (T, C)

    # ---- per-head QKV projections (MXU, f32 accumulation) ----
    q = jnp.dot(x1, wq_ref[0], preferred_element_type=jnp.float32) + bq_ref[0]  # (T, Dh)
    k = jnp.dot(x2, wk_ref[0], preferred_element_type=jnp.float32) + bk_ref[0]
    v = jnp.dot(x2, wv_ref[0], preferred_element_type=jnp.float32) + bv_ref[0]

    T, Dh = q.shape
    half = Dh // 2
    cos = cos_ref[...]                               # (T, Dh//2)
    sin = sin_ref[...]

    # ---- rotary embedding (rotate-half layout; pure VPU, no MXU matmul) ----
    # The wrapper permuted the q/k weight columns so that the first half of the
    # head dim holds the even (real) components and the second half the odd
    # (imaginary) components of the original interleaved layout.
    def rope(x):
        xe = x[:, :half]
        xo = x[:, half:]
        return jnp.concatenate([xe * cos - xo * sin,
                                xo * cos + xe * sin], axis=1)

    q = rope(q)
    k = rope(k)

    # ---- scores + offset-causal mask generated in-kernel ----
    scale = float(Dh) ** -0.5
    s = lax.dot_general(q, k, (((1,), (1,)), ((), ())),
                        preferred_element_type=jnp.float32) * scale          # (T, T)
    row = lax.broadcasted_iota(jnp.int32, (T, T), 0)
    col = lax.broadcasted_iota(jnp.int32, (T, T), 1)
    s = jnp.where(col <= row + src_len, s, -1e30)    # finite bias: no NaN rows

    # ---- softmax (f32), reciprocal on the EUP ----
    s = s - jnp.max(s, axis=-1, keepdims=True)
    p = jnp.exp(s)
    p = p * pl.reciprocal(jnp.sum(p, axis=-1, keepdims=True), approx=True)
    # TODO(synk): nn.Dropout on the attention probs is treated as identity
    # (deterministic / inference behaviour).

    # ---- attention output + per-head slice of the output projection ----
    out_h = jnp.dot(p.astype(v.dtype), v, preferred_element_type=jnp.float32)  # (T, Dh)
    acc_ref[...] += jnp.dot(out_h, wp_ref[0], preferred_element_type=jnp.float32)

    @pl.when(h == n_h - 1)
    def _():
        o_ref[0] = acc_ref[...].astype(o_ref.dtype)


# ------------------------------ wrapper -------------------------------------- #

def masked_mh_cross_attention(x1, x2, params, *, n_heads, head_dim, max_len, src_len):
    B, T, C = x1.shape
    HD = n_heads * head_dim
    assert HD == C and head_dim % 2 == 0 and T <= max_len
    half = head_dim // 2

    # rotary tables (precompute_freqs_cis) in rotate-half form: (T, Dh//2)
    freqs = 1.0 / (10000.0 ** (jnp.arange(0, head_dim, 2)[:half]
                               .astype(jnp.float32) / head_dim))
    ang = jnp.outer(jnp.arange(max_len, dtype=jnp.float32), freqs)[:T]
    cos_t = jnp.cos(ang)
    sin_t = jnp.sin(ang)

    # de-interleaving column permutation within each head (evens then odds);
    # applied identically to the q and k projections, attention is invariant.
    perm = jnp.concatenate([jnp.arange(0, head_dim, 2), jnp.arange(1, head_dim, 2)])

    def head_slabs_qk(w):      # (C, HD) -> (H, C, Dh), de-interleaved columns
        return w.reshape(C, n_heads, head_dim).transpose(1, 0, 2)[:, :, perm]

    def head_slabs_v(w):       # (C, HD) -> (H, C, Dh)
        return w.reshape(C, n_heads, head_dim).transpose(1, 0, 2)

    def head_bias_qk(b):       # (1, HD) -> (H, 1, Dh), de-interleaved
        return b.reshape(n_heads, head_dim)[:, perm][:, None, :]

    def head_bias_v(b):        # (1, HD) -> (H, 1, Dh)
        return b.reshape(n_heads, head_dim)[:, None, :]

    wq_h = head_slabs_qk(params["wq"]); bq_h = head_bias_qk(params["bq"])
    wk_h = head_slabs_qk(params["wk"]); bk_h = head_bias_qk(params["bk"])
    wv_h = head_slabs_v(params["wv"]);  bv_h = head_bias_v(params["bv"])
    wp_h = params["wp"].reshape(n_heads, head_dim, C)       # (H, Dh, C)

    kernel = functools.partial(_mha_kernel, src_len)

    return pl.pallas_call(
        kernel,
        out_shape=jax.ShapeDtypeStruct((B, T, C), x1.dtype),
        grid=(B, n_heads),
        in_specs=[
            pl.BlockSpec((1, T, C), lambda b, h: (b, 0, 0)),           # x1
            pl.BlockSpec((1, T, C), lambda b, h: (b, 0, 0)),           # x2
            pl.BlockSpec((1, C, head_dim), lambda b, h: (h, 0, 0)),    # Wq slab
            pl.BlockSpec((1, 1, head_dim), lambda b, h: (h, 0, 0)),    # bq slab
            pl.BlockSpec((1, C, head_dim), lambda b, h: (h, 0, 0)),    # Wk slab
            pl.BlockSpec((1, 1, head_dim), lambda b, h: (h, 0, 0)),    # bk slab
            pl.BlockSpec((1, C, head_dim), lambda b, h: (h, 0, 0)),    # Wv slab
            pl.BlockSpec((1, 1, head_dim), lambda b, h: (h, 0, 0)),    # bv slab
            pl.BlockSpec((1, head_dim, C), lambda b, h: (h, 0, 0)),    # Wproj slab
            pl.BlockSpec((T, half), lambda b, h: (0, 0)),              # cos
            pl.BlockSpec((T, half), lambda b, h: (0, 0)),              # sin
        ],
        out_specs=pl.BlockSpec((1, T, C), lambda b, h: (b, 0, 0)),
        scratch_shapes=[pltpu.VMEM((T, C), jnp.float32)],
        compiler_params=pltpu.CompilerParams(
            dimension_semantics=("parallel", "arbitrary"),
            vmem_limit_bytes=32 * 1024 * 1024),
    )(x1, x2, wq_h, bq_h, wk_h, bk_h, wv_h, bv_h, wp_h, cos_t, sin_t)


# --------------------------- pure-JAX reference ------------------------------ #

def reference(x1, x2, params, *, n_heads, head_dim, max_len, src_len):
    B, T, C = x1.shape
    q = x1 @ params["wq"] + params["bq"][0]
    k = x2 @ params["wk"] + params["bk"][0]
    v = x2 @ params["wv"] + params["bv"][0]
    q = q.reshape(B, T, n_heads, head_dim)
    k = k.reshape(B, T, n_heads, head_dim)
    v = v.reshape(B, T, n_heads, head_dim)

    freqs = 1.0 / (10000.0 ** (jnp.arange(0, head_dim, 2)[: head_dim // 2]
                               .astype(jnp.float32) / head_dim))
    ang = jnp.outer(jnp.arange(max_len, dtype=jnp.float32), freqs)[:T]
    fc = jnp.cos(ang) + 1j * jnp.sin(ang)                       # (T, Dh//2)

    def rope(x):
        xc = x.reshape(B, T, n_heads, head_dim // 2, 2)
        xc = xc[..., 0] + 1j * xc[..., 1]
        xr = xc * fc[None, :, None, :]
        return jnp.stack([jnp.real(xr), jnp.imag(xr)], axis=-1).reshape(
            B, T, n_heads, head_dim)

    q, k = rope(q), rope(k)
    q = q.transpose(0, 2, 1, 3)
    k = k.transpose(0, 2, 1, 3)
    v = v.transpose(0, 2, 1, 3)
    attn = jnp.einsum("bhqd,bhkd->bhqk", q, k) * head_dim ** -0.5
    tril = jnp.tril(jnp.ones((max_len, max_len)), k=src_len)[:T, :T]
    attn = jnp.where(tril[None, None] > 0, attn, -jnp.inf)
    attn = jax.nn.softmax(attn, axis=-1)
    out = jnp.einsum("bhqk,bhkd->bhqd", attn, v)
    out = out.transpose(0, 2, 1, 3).reshape(B, T, C)
    return out @ params["wp"]


# --------------------------------- main --------------------------------------- #

if __name__ == "__main__":
    # small deterministic config
    B, T = 2, 8
    n_heads, head_dim = 4, 8
    embed_dim = n_heads * head_dim           # 32
    max_len, src_len = 16, 2

    key = jax.random.PRNGKey(0)
    ks = jax.random.split(key, 10)
    scale = 0.1
    params = {
        "wq": scale * jax.random.normal(ks[0], (embed_dim, embed_dim), jnp.float32),
        "bq": scale * jax.random.normal(ks[1], (1, embed_dim), jnp.float32),
        "wk": scale * jax.random.normal(ks[2], (embed_dim, embed_dim), jnp.float32),
        "bk": scale * jax.random.normal(ks[3], (1, embed_dim), jnp.float32),
        "wv": scale * jax.random.normal(ks[4], (embed_dim, embed_dim), jnp.float32),
        "bv": scale * jax.random.normal(ks[5], (1, embed_dim), jnp.float32),
        "wp": scale * jax.random.normal(ks[6], (embed_dim, embed_dim), jnp.float32),
    }
    x1 = jax.random.normal(ks[7], (B, T, embed_dim), jnp.float32)
    x2 = jax.random.normal(ks[8], (B, T, embed_dim), jnp.float32)

    out = masked_mh_cross_attention(
        x1, x2, params,
        n_heads=n_heads, head_dim=head_dim, max_len=max_len, src_len=src_len)
    out = jax.block_until_ready(out)

    ref = reference(
        x1, x2, params,
        n_heads=n_heads, head_dim=head_dim, max_len=max_len, src_len=src_len)
    ref = jax.block_until_ready(ref)

    assert out.shape == (B, T, embed_dim)
    assert jnp.allclose(out, ref, atol=2e-3, rtol=2e-3), (
        f"max abs diff {jnp.max(jnp.abs(out - ref))}")
    print("KERNEL_OK")
</pallas_src>

<mosaic_0001>
module attributes {stable_mosaic.version = 11 : i64} {
  func.func @_mha_kernel(%arg0: i32, %arg1: i32, %arg2: memref<1x8x32xf32, #tpu.memory_space<vmem>>, %arg3: memref<1x8x32xf32, #tpu.memory_space<vmem>>, %arg4: memref<1x32x8xf32, #tpu.memory_space<vmem>>, %arg5: memref<1x1x8xf32, #tpu.memory_space<vmem>>, %arg6: memref<1x32x8xf32, #tpu.memory_space<vmem>>, %arg7: memref<1x1x8xf32, #tpu.memory_space<vmem>>, %arg8: memref<1x32x8xf32, #tpu.memory_space<vmem>>, %arg9: memref<1x1x8xf32, #tpu.memory_space<vmem>>, %arg10: memref<1x8x32xf32, #tpu.memory_space<vmem>>, %arg11: memref<8x4xf32, #tpu.memory_space<vmem>>, %arg12: memref<8x4xf32, #tpu.memory_space<vmem>>, %arg13: memref<1x8x32xf32, #tpu.memory_space<vmem>>, %arg14: memref<8x32xf32, #tpu.memory_space<vmem>>) attributes {dimension_semantics = [#tpu.dimension_semantics<parallel>, #tpu.dimension_semantics<arbitrary>], iteration_bounds = array<i64: 2, 4>, scalar_prefetch = 0 : i64, scratch_operands = 1 : i64, tpu.core_type = #tpu.core_type<tc>, window_params = [{transform_indices = @transform_0, window_bounds = array<i64: 1, 8, 32>}, {transform_indices = @transform_1, window_bounds = array<i64: 1, 8, 32>}, {transform_indices = @transform_2, window_bounds = array<i64: 1, 32, 8>}, {transform_indices = @transform_3, window_bounds = array<i64: 1, 1, 8>}, {transform_indices = @transform_4, window_bounds = array<i64: 1, 32, 8>}, {transform_indices = @transform_5, window_bounds = array<i64: 1, 1, 8>}, {transform_indices = @transform_6, window_bounds = array<i64: 1, 32, 8>}, {transform_indices = @transform_7, window_bounds = array<i64: 1, 1, 8>}, {transform_indices = @transform_8, window_bounds = array<i64: 1, 8, 32>}, {pipeline_mode = #tpu.pipeline_mode<synchronous>, transform_indices = @transform_9, window_bounds = array<i64: 8, 4>}, {pipeline_mode = #tpu.pipeline_mode<synchronous>, transform_indices = @transform_10, window_bounds = array<i64: 8, 4>}, {transform_indices = @transform_11, window_bounds = array<i64: 1, 8, 32>}]} {
    %c0_i32 = arith.constant 0 : i32
    %0 = arith.cmpi eq, %arg1, %c0_i32 : i32
    %1 = arith.extui %0 : i1 to i32
    %c0_i32_0 = arith.constant 0 : i32
    %2 = arith.cmpi ne, %1, %c0_i32_0 : i32
    scf.if %2 {
      %cst_45 = arith.constant 0.000000e+00 : f32
      %78 = vector.broadcast %cst_45 : f32 to vector<8x32xf32>
      %c0_46 = arith.constant 0 : index
      %c0_47 = arith.constant 0 : index
      %79 = vector.load %arg14[%c0_46, %c0_47] : memref<8x32xf32, #tpu.memory_space<vmem>>, vector<8x32xf32>
      tpu.vector_store %arg14[%c0_46, %c0_47], %78 {strides = array<i32>} : memref<8x32xf32, #tpu.memory_space<vmem>>, vector<8x32xf32>,
    } else {
    }
    %c0 = arith.constant 0 : index
    %c0_1 = arith.constant 0 : index
    %c0_2 = arith.constant 0 : index
    %3 = vector.load %arg2[%c0, %c0_1, %c0_2] : memref<1x8x32xf32, #tpu.memory_space<vmem>>, vector<1x8x32xf32>
    %4 = vector.shape_cast %3 : vector<1x8x32xf32> to vector<8x32xf32>
    %c0_3 = arith.constant 0 : index
    %c0_4 = arith.constant 0 : index
    %c0_5 = arith.constant 0 : index
    %5 = vector.load %arg3[%c0_3, %c0_4, %c0_5] : memref<1x8x32xf32, #tpu.memory_space<vmem>>, vector<1x8x32xf32>
    %6 = vector.shape_cast %5 : vector<1x8x32xf32> to vector<8x32xf32>
    %c0_6 = arith.constant 0 : index
    %c0_7 = arith.constant 0 : index
    %c0_8 = arith.constant 0 : index
    %7 = vector.load %arg4[%c0_6, %c0_7, %c0_8] : memref<1x32x8xf32, #tpu.memory_space<vmem>>, vector<1x32x8xf32>
    %8 = vector.shape_cast %7 : vector<1x32x8xf32> to vector<32x8xf32>
    %cst = arith.constant dense<0.000000e+00> : vector<8x8xf32>
    %9 = tpu.matmul %4, %8, %cst {dimension_numbers = #tpu.dot_dimension_numbers<[1], [0], [0], [1], [0, 0, 1, 1], [], []>} : vector<8x32xf32>, vector<32x8xf32>, vector<8x8xf32> -> vector<8x8xf32>
    %c0_9 = arith.constant 0 : index
    %c0_10 = arith.constant 0 : index
    %c0_11 = arith.constant 0 : index
    %10 = vector.load %arg5[%c0_9, %c0_10, %c0_11] : memref<1x1x8xf32, #tpu.memory_space<vmem>>, vector<1x1x8xf32>
    %11 = vector.shape_cast %10 : vector<1x1x8xf32> to vector<1x8xf32>
    %12 = vector.broadcast %11 : vector<1x8xf32> to vector<8x8xf32>
    %13 = arith.addf %9, %12 : vector<8x8xf32>
    %c0_12 = arith.constant 0 : index
    %c0_13 = arith.constant 0 : index
    %c0_14 = arith.constant 0 : index
    %14 = vector.load %arg6[%c0_12, %c0_13, %c0_14] : memref<1x32x8xf32, #tpu.memory_space<vmem>>, vector<1x32x8xf32>
    %15 = vector.shape_cast %14 : vector<1x32x8xf32> to vector<32x8xf32>
    %cst_15 = arith.constant dense<0.000000e+00> : vector<8x8xf32>
    %16 = tpu.matmul %6, %15, %cst_15 {dimension_numbers = #tpu.dot_dimension_numbers<[1], [0], [0], [1], [0, 0, 1, 1], [], []>} : vector<8x32xf32>, vector<32x8xf32>, vector<8x8xf32> -> vector<8x8xf32>
    %c0_16 = arith.constant 0 : index
    %c0_17 = arith.constant 0 : index
    %c0_18 = arith.constant 0 : index
    %17 = vector.load %arg7[%c0_16, %c0_17, %c0_18] : memref<1x1x8xf32, #tpu.memory_space<vmem>>, vector<1x1x8xf32>
    %18 = vector.shape_cast %17 : vector<1x1x8xf32> to vector<1x8xf32>
    %19 = vector.broadcast %18 : vector<1x8xf32> to vector<8x8xf32>
    %20 = arith.addf %16, %19 : vector<8x8xf32>
    %c0_19 = arith.constant 0 : index
    %c0_20 = arith.constant 0 : index
    %c0_21 = arith.constant 0 : index
    %21 = vector.load %arg8[%c0_19, %c0_20, %c0_21] : memref<1x32x8xf32, #tpu.memory_space<vmem>>, vector<1x32x8xf32>
    %22 = vector.shape_cast %21 : vector<1x32x8xf32> to vector<32x8xf32>
    %cst_22 = arith.constant dense<0.000000e+00> : vector<8x8xf32>
    %23 = tpu.matmul %6, %22, %cst_22 {dimension_numbers = #tpu.dot_dimension_numbers<[1], [0], [0], [1], [0, 0, 1, 1], [], []>} : vector<8x32xf32>, vector<32x8xf32>, vector<8x8xf32> -> vector<8x8xf32>
    %c0_23 = arith.constant 0 : index
    %c0_24 = arith.constant 0 : index
    %c0_25 = arith.constant 0 : index
    %24 = vector.load %arg9[%c0_23, %c0_24, %c0_25] : memref<1x1x8xf32, #tpu.memory_space<vmem>>, vector<1x1x8xf32>
    %25 = vector.shape_cast %24 : vector<1x1x8xf32> to vector<1x8xf32>
    %26 = vector.broadcast %25 : vector<1x8xf32> to vector<8x8xf32>
    %27 = arith.addf %23, %26 : vector<8x8xf32>
    %c0_26 = arith.constant 0 : index
    %c0_27 = arith.constant 0 : index
    %28 = vector.load %arg11[%c0_26, %c0_27] : memref<8x4xf32, #tpu.memory_space<vmem>>, vector<8x4xf32>
    %c0_28 = arith.constant 0 : index
    %c0_29 = arith.constant 0 : index
    %29 = vector.load %arg12[%c0_28, %c0_29] : memref<8x4xf32, #tpu.memory_space<vmem>>, vector<8x4xf32>
    %30 = vector.extract_strided_slice %13 {offsets = [0, 0], sizes = [8, 4], strides = [1, 1]} : vector<8x8xf32> to vector<8x4xf32>
    %31 = vector.extract_strided_slice %13 {offsets = [0, 4], sizes = [8, 4], strides = [1, 1]} : vector<8x8xf32> to vector<8x4xf32>
    %32 = arith.mulf %30, %28 : vector<8x4xf32>
    %33 = arith.mulf %31, %29 : vector<8x4xf32>
    %34 = arith.subf %32, %33 : vector<8x4xf32>
    %35 = arith.mulf %31, %28 : vector<8x4xf32>
    %36 = arith.mulf %30, %29 : vector<8x4xf32>
    %37 = arith.addf %35, %36 : vector<8x4xf32>
    %38 = tpu.concatenate %34, %37 in 1 : vector<8x4xf32>, vector<8x4xf32> -> vector<8x8xf32>
    %39 = vector.extract_strided_slice %20 {offsets = [0, 0], sizes = [8, 4], strides = [1, 1]} : vector<8x8xf32> to vector<8x4xf32>
    %40 = vector.extract_strided_slice %20 {offsets = [0, 4], sizes = [8, 4], strides = [1, 1]} : vector<8x8xf32> to vector<8x4xf32>
    %41 = arith.mulf %39, %28 : vector<8x4xf32>
    %42 = arith.mulf %40, %29 : vector<8x4xf32>
    %43 = arith.subf %41, %42 : vector<8x4xf32>
    %44 = arith.mulf %40, %28 : vector<8x4xf32>
    %45 = arith.mulf %39, %29 : vector<8x4xf32>
    %46 = arith.addf %44, %45 : vector<8x4xf32>
    %47 = tpu.concatenate %43, %46 in 1 : vector<8x4xf32>, vector<8x4xf32> -> vector<8x8xf32>
    %cst_30 = arith.constant dense<0.000000e+00> : vector<8x8xf32>
    %48 = tpu.matmul %38, %47, %cst_30 {dimension_numbers = #tpu.dot_dimension_numbers<[1], [1], [0], [0], [0, 0, 1, 0], [], []>} : vector<8x8xf32>, vector<8x8xf32>, vector<8x8xf32> -> vector<8x8xf32>
    %cst_31 = arith.constant 0.353553385 : f32
    %49 = vector.broadcast %cst_31 : f32 to vector<8x8xf32>
    %50 = arith.mulf %48, %49 : vector<8x8xf32>
    %51 = tpu.iota {dimensions = array<i32: 0>} : vector<8x8xi32>
    %52 = tpu.iota {dimensions = array<i32: 1>} : vector<8x8xi32>
    %c2_i32 = arith.constant 2 : i32
    %53 = vector.broadcast %c2_i32 : i32 to vector<8x8xi32>
    %54 = arith.addi %51, %53 : vector<8x8xi32>
    %55 = arith.cmpi sle, %52, %54 : vector<8x8xi32>
    %cst_32 = arith.constant -1.000000e+30 : f32
    %56 = vector.broadcast %cst_32 : f32 to vector<8x8xf32>
    %57 = arith.select %55, %50, %56 : vector<8x8xi1>, vector<8x8xf32>
    %cst_33 = arith.constant dense<0xFF800000> : vector<8xf32>
    %58 = vector.multi_reduction <maximumf>, %57, %cst_33 [1] : vector<8x8xf32> to vector<8xf32>
    %59 = vector.shape_cast %58 : vector<8xf32> to vector<8x1xf32>
    %60 = vector.broadcast %59 : vector<8x1xf32> to vector<8x8xf32>
    %61 = arith.subf %57, %60 : vector<8x8xf32>
    %62 = math.exp %61 : vector<8x8xf32>
    %cst_34 = arith.constant dense<0.000000e+00> : vector<8xf32>
    %63 = vector.multi_reduction <add>, %62, %cst_34 [1] : vector<8x8xf32> to vector<8xf32>
    %64 = vector.shape_cast %63 : vector<8xf32> to vector<8x1xf32>
    %65 = tpu.reciprocal %64 {approx = true} : vector<8x1xf32> -> vector<8x1xf32>
    %66 = vector.broadcast %65 : vector<8x1xf32> to vector<8x8xf32>
    %67 = arith.mulf %62, %66 : vector<8x8xf32>
    %cst_35 = arith.constant dense<0.000000e+00> : vector<8x8xf32>
    %68 = tpu.matmul %67, %27, %cst_35 {dimension_numbers = #tpu.dot_dimension_numbers<[1], [0], [0], [1], [0, 0, 1, 1], [], []>} : vector<8x8xf32>, vector<8x8xf32>, vector<8x8xf32> -> vector<8x8xf32>
    %c0_36 = arith.constant 0 : index
    %c0_37 = arith.constant 0 : index
    %69 = vector.load %arg14[%c0_36, %c0_37] : memref<8x32xf32, #tpu.memory_space<vmem>>, vector<8x32xf32>
    %c0_38 = arith.constant 0 : index
    %c0_39 = arith.constant 0 : index
    %c0_40 = arith.constant 0 : index
    %70 = vector.load %arg10[%c0_38, %c0_39, %c0_40] : memref<1x8x32xf32, #tpu.memory_space<vmem>>, vector<1x8x32xf32>
    %71 = vector.shape_cast %70 : vector<1x8x32xf32> to vector<8x32xf32>
    %cst_41 = arith.constant dense<0.000000e+00> : vector<8x32xf32>
    %72 = tpu.matmul %68, %71, %cst_41 {dimension_numbers = #tpu.dot_dimension_numbers<[1], [0], [0], [1], [0, 0, 1, 1], [], []>} : vector<8x8xf32>, vector<8x32xf32>, vector<8x32xf32> -> vector<8x32xf32>
    %73 = arith.addf %69, %72 : vector<8x32xf32>
    %c0_42 = arith.constant 0 : index
    %c0_43 = arith.constant 0 : index
    %74 = vector.load %arg14[%c0_42, %c0_43] : memref<8x32xf32, #tpu.memory_space<vmem>>, vector<8x32xf32>
    tpu.vector_store %arg14[%c0_42, %c0_43], %73 {strides = array<i32>} : memref<8x32xf32, #tpu.memory_space<vmem>>, vector<8x32xf32>,
    %c3_i32 = arith.constant 3 : i32
    %75 = arith.cmpi eq, %arg1, %c3_i32 : i32
    %76 = arith.extui %75 : i1 to i32
    %c0_i32_44 = arith.constant 0 : i32
    %77 = arith.cmpi ne, %76, %c0_i32_44 : i32
    scf.if %77 {
      %c0_45 = arith.constant 0 : index
      %c0_46 = arith.constant 0 : index
      %78 = vector.load %arg14[%c0_45, %c0_46] : memref<8x32xf32, #tpu.memory_space<vmem>>, vector<8x32xf32>
      %c0_47 = arith.constant 0 : index
      %c0_48 = arith.constant 0 : index
      %c0_49 = arith.constant 0 : index
      %79 = vector.load %arg13[%c0_47, %c0_48, %c0_49] : memref<1x8x32xf32, #tpu.memory_space<vmem>>, vector<1x8x32xf32>
      %80 = vector.shape_cast %79 : vector<1x8x32xf32> to vector<8x32xf32>
      %81 = vector.shape_cast %78 : vector<8x32xf32> to vector<1x8x32xf32>
      tpu.vector_store %arg13[%c0_47, %c0_48, %c0_49], %81 {strides = array<i32>} : memref<1x8x32xf32, #tpu.memory_space<vmem>>, vector<1x8x32xf32>,
    } else {
    }
    return
  }
  func.func @transform_0(%arg0: i32, %arg1: i32) -> (i32, i32, i32) {
    %c0_i32 = arith.constant 0 : i32
    %c0_i32_0 = arith.constant 0 : i32
    %c0_i32_1 = arith.constant 0 : i32
    return %arg0, %c0_i32, %c0_i32_0 : i32, i32, i32
  }
  func.func @transform_1(%arg0: i32, %arg1: i32) -> (i32, i32, i32) {
    %c0_i32 = arith.constant 0 : i32
    %c0_i32_0 = arith.constant 0 : i32
    %c0_i32_1 = arith.constant 0 : i32
    return %arg0, %c0_i32, %c0_i32_0 : i32, i32, i32
  }
  func.func @transform_2(%arg0: i32, %arg1: i32) -> (i32, i32, i32) {
    %c0_i32 = arith.constant 0 : i32
    %c0_i32_0 = arith.constant 0 : i32
    %c0_i32_1 = arith.constant 0 : i32
    return %arg1, %c0_i32, %c0_i32_0 : i32, i32, i32
  }
  func.func @transform_3(%arg0: i32, %arg1: i32) -> (i32, i32, i32) {
    %c0_i32 = arith.constant 0 : i32
    %c0_i32_0 = arith.constant 0 : i32
    %c0_i32_1 = arith.constant 0 : i32
    return %arg1, %c0_i32, %c0_i32_0 : i32, i32, i32
  }
  func.func @transform_4(%arg0: i32, %arg1: i32) -> (i32, i32, i32) {
    %c0_i32 = arith.constant 0 : i32
    %c0_i32_0 = arith.constant 0 : i32
    %c0_i32_1 = arith.constant 0 : i32
    return %arg1, %c0_i32, %c0_i32_0 : i32, i32, i32
  }
  func.func @transform_5(%arg0: i32, %arg1: i32) -> (i32, i32, i32) {
    %c0_i32 = arith.constant 0 : i32
    %c0_i32_0 = arith.constant 0 : i32
    %c0_i32_1 = arith.constant 0 : i32
    return %arg1, %c0_i32, %c0_i32_0 : i32, i32, i32
  }
  func.func @transform_6(%arg0: i32, %arg1: i32) -> (i32, i32, i32) {
    %c0_i32 = arith.constant 0 : i32
    %c0_i32_0 = arith.constant 0 : i32
    %c0_i32_1 = arith.constant 0 : i32
    return %arg1, %c0_i32, %c0_i32_0 : i32, i32, i32
  }
  func.func @transform_7(%arg0: i32, %arg1: i32) -> (i32, i32, i32) {
    %c0_i32 = arith.constant 0 : i32
    %c0_i32_0 = arith.constant 0 : i32
    %c0_i32_1 = arith.constant 0 : i32
    return %arg1, %c0_i32, %c0_i32_0 : i32, i32, i32
  }
  func.func @transform_8(%arg0: i32, %arg1: i32) -> (i32, i32, i32) {
    %c0_i32 = arith.constant 0 : i32
    %c0_i32_0 = arith.constant 0 : i32
    %c0_i32_1 = arith.constant 0 : i32
    return %arg1, %c0_i32, %c0_i32_0 : i32, i32, i32
  }
  func.func @transform_9(%arg0: i32, %arg1: i32) -> (i32, i32) {
    %c0_i32 = arith.constant 0 : i32
    %c0_i32_0 = arith.constant 0 : i32
    %c0_i32_1 = arith.constant 0 : i32
    return %c0_i32, %c0_i32_0 : i32, i32
  }
  func.func @transform_10(%arg0: i32, %arg1: i32) -> (i32, i32) {
    %c0_i32 = arith.constant 0 : i32
    %c0_i32_0 = arith.constant 0 : i32
    %c0_i32_1 = arith.constant 0 : i32
    return %c0_i32, %c0_i32_0 : i32, i32
  }
  func.func @transform_11(%arg0: i32, %arg1: i32) -> (i32, i32, i32) {
    %c0_i32 = arith.constant 0 : i32
    %c0_i32_0 = arith.constant 0 : i32
    %c0_i32_1 = arith.constant 0 : i32
    return %arg0, %c0_i32, %c0_i32_0 : i32, i32, i32
  }
}

</mosaic_0001>

<llo_original>
// kernel: tpu_custom_call.1
$region0: #{tpu_custom_call.1}
  #allocation0 [shape = 'u32[]', space=smem, size = 0x4, offset = 0x4, fixed_abs, tag = 'smem constant byte address 0x4 - core index']
  #allocation1 [shape = 'u32[144,128]{1,0:T(1,128)}', space=vmem, size = 0x12000, scoped, tag = 'internal scratch']
  #allocation2 [shape = 'f32[8,32]{1,0:T(8,128)}', space=vmem, size = 0x1000, scoped, tag = 'scratch operand']
  %s0 = inlined_call_operand.vmem [shape: f32[2,8,32], index: 0, kind: input, shape index: {}]
  %s1 = inlined_call_operand.vmem [shape: f32[2,8,32], index: 1, kind: input, shape index: {}]
  %s2 = inlined_call_operand.vmem [shape: f32[4,32,8], index: 2, kind: input, shape index: {}]
  %s3 = inlined_call_operand.vmem [shape: f32[4,1,8], index: 3, kind: input, shape index: {}]
  %s4 = inlined_call_operand.vmem [shape: f32[4,32,8], index: 4, kind: input, shape index: {}]
  %s5 = inlined_call_operand.vmem [shape: f32[4,1,8], index: 5, kind: input, shape index: {}]
  %s6 = inlined_call_operand.vmem [shape: f32[4,32,8], index: 6, kind: input, shape index: {}]
  %s7 = inlined_call_operand.vmem [shape: f32[4,1,8], index: 7, kind: input, shape index: {}]
  %s8 = inlined_call_operand.vmem [shape: f32[4,8,32], index: 8, kind: input, shape index: {}]
  %s9 = inlined_call_operand.vmem [shape: f32[8,4], index: 9, kind: input, shape index: {}]
  %s10 = inlined_call_operand.vmem [shape: f32[8,4], index: 10, kind: input, shape index: {}]
  %s11 = inlined_call_operand.hbm [shape: f32[2,8,32], index: 11, kind: output, shape index: {}]
  %s12 = sld [smem:[#allocation0]]
  $region85: #{tpu_custom_call.1} parent=0
    _
  %s14 = ssub.s32 1, %s12
  %s15 = scalar_select 0, %s14, %s12
  $region1: #{tpu_custom_call.1} parent=0
    #allocation3 [shape = 'u8[8192]{0}', space=vmem, size = 0x2000, scoped, tag = 'output window, operand 0']
    #allocation4 [shape = 's32[2]{0}', space=sflag, size = 0x8, scoped, tag = 'scoped memory for tpu_custom_call.1']
    %16 = vsyncpa [#allocation4], 0
    %s17 = scalar_lea.sflag [#allocation4], 1
    %18 = vsyncpa %s17, 0
    loop: start=0, step=1, limit=10
    $region2: #{tpu_custom_call.1} parent=1 // loop_pre_header
      _
    $region3: #{tpu_custom_call.1} parent=1 // loop_header
      %s20 = sphi 0, %s24
      %p21 = scmp.ge.s32.totalorder %s20, 10
      %s27 = sphi 0, %s39
      %s28 = sphi 0, %s35
      %s29 = sphi 0, %s27
      %s30 = sphi 0, %s28
      %s31 = sphi 0, %s29
      %s32 = sphi 0, %s30
      %s42 = sphi 0, %s44
      %s45 = sphi 0, %s42
      %s46 = sphi 0, %s45
      %s62 = sphi 0, %s46
      %s68 = sphi 0, %s70
      %s71 = sphi 0, %s68
      %s72 = sphi 0, %s71
      %s88 = sphi 0, %s72
      %s94 = sphi 0, %s96
      %s97 = sphi 0, %s94
      %s98 = sphi 0, %s97
      %s114 = sphi 0, %s98
      %s120 = sphi 0, %s122
      %s123 = sphi 0, %s120
      %s124 = sphi 0, %s123
      %s140 = sphi 0, %s124
      %s146 = sphi 0, %s148
      %s149 = sphi 0, %s146
      %s150 = sphi 0, %s149
      %s166 = sphi 0, %s150
      %s172 = sphi 0, %s174
      %s175 = sphi 0, %s172
      %s176 = sphi 0, %s175
      %s192 = sphi 0, %s176
      %s198 = sphi 0, %s200
      %s201 = sphi 0, %s198
      %s202 = sphi 0, %s201
      %s218 = sphi 0, %s202
      %s224 = sphi 0, %s226
      %s227 = sphi 0, %s224
      %s228 = sphi 0, %s227
      %s244 = sphi 0, %s228
      %s250 = sphi 0, %s252
      %s253 = sphi 0, %s250
      %s254 = sphi 0, %s253
      %s270 = sphi 0, %s254
      %s274 = sphi 0, %s274
      %s276 = sphi 0, %s274
      %s277 = sphi 0, %s276
      %s291 = sphi 0, %s277
      %s295 = sphi 0, %s295
      %s297 = sphi 0, %s295
      %s298 = sphi 0, %s297
      %s312 = sphi 0, %s298
      %s318 = sphi 0, %s320
      %s321 = sphi 0, %s318
      %s322 = sphi 0, %s321
      %s338 = sphi 0, %s322
    $region4: #{tpu_custom_call.1} parent=1 // loop_header_branch
      %23 = sbr.rel (%p21) target = $region8
    $region5: #{tpu_custom_call.1} parent=1 // loop_body
      %s25 = ssub.s32 %s20, 1
      %s26 = ssub.s32 %s20, 2
      %s33 = sadd.s32 1, %s28
      %p34 = scmp.ge.s32.totalorder %s33, 4
      %s35 = scalar_select %p34, 0, %s33
      %s36 = sadd.s32 1, %s27
      %s37 = scalar_select %p34, %s36, %s27
      %p38 = scmp.ge.s32.totalorder %s37, 2
      %s39 = scalar_select %p38, 0, %s37
      %s40 = ssub.s32 %s27, %s39
      %p41 = scmp.eq.s32.totalorder %s40, 0
      %s43 = sadd.s32 %s42, 1
      %s44 = scalar_select %p41, %s42, %s43
      %p47 = pneg %p41
      %p48 = scmp.eq.s32.totalorder %s20, 7
      %p49 = por %p47, %p48
      %p50 = scmp.ne.s32.totalorder %s42, %s45
      %p51 = scmp.eq.s32.totalorder %s20, 0
      %p52 = por %p50, %p51
      %p53 = scmp.ne.s32.totalorder %s42, %s45
      %p54 = scmp.eq.s32.totalorder %s25, 7
      %p55 = por %p53, %p54
      %p56 = scmp.ne.s32.totalorder %s45, %s46
      %p57 = scmp.eq.s32.totalorder %s25, 0
      %p58 = por %p56, %p57
      %p59 = scmp.ne.s32.totalorder %s45, %s46
      %p60 = scmp.eq.s32.totalorder %s26, 7
      %p61 = por %p59, %p60
      %p63 = scmp.ne.s32.totalorder %s46, %s62
      %p64 = scmp.eq.s32.totalorder %s26, 0
      %p65 = por %p63, %p64
      %s66 = ssub.s32 %s27, %s39
      %p67 = scmp.eq.s32.totalorder %s66, 0
      %s69 = sadd.s32 %s68, 1
      %s70 = scalar_select %p67, %s68, %s69
      %p73 = pneg %p67
      %p74 = scmp.eq.s32.totalorder %s20, 7
      %p75 = por %p73, %p74
      %p76 = scmp.ne.s32.totalorder %s68, %s71
      %p77 = scmp.eq.s32.totalorder %s20, 0
      %p78 = por %p76, %p77
      %p79 = scmp.ne.s32.totalorder %s68, %s71
      %p80 = scmp.eq.s32.totalorder %s25, 7
      %p81 = por %p79, %p80
      %p82 = scmp.ne.s32.totalorder %s71, %s72
      %p83 = scmp.eq.s32.totalorder %s25, 0
      %p84 = por %p82, %p83
      %p85 = scmp.ne.s32.totalorder %s71, %s72
      %p86 = scmp.eq.s32.totalorder %s26, 7
      %p87 = por %p85, %p86
      %p89 = scmp.ne.s32.totalorder %s72, %s88
      %p90 = scmp.eq.s32.totalorder %s26, 0
      %p91 = por %p89, %p90
      %s92 = ssub.s32 %s28, %s35
      %p93 = scmp.eq.s32.totalorder %s92, 0
      %s95 = sadd.s32 %s94, 1
      %s96 = scalar_select %p93, %s94, %s95
      %p99 = pneg %p93
      %p100 = scmp.eq.s32.totalorder %s20, 7
      %p101 = por %p99, %p100
      %p102 = scmp.ne.s32.totalorder %s94, %s97
      %p103 = scmp.eq.s32.totalorder %s20, 0
      %p104 = por %p102, %p103
      %p105 = scmp.ne.s32.totalorder %s94, %s97
      %p106 = scmp.eq.s32.totalorder %s25, 7
      %p107 = por %p105, %p106
      %p108 = scmp.ne.s32.totalorder %s97, %s98
      %p109 = scmp.eq.s32.totalorder %s25, 0
      %p110 = por %p108, %p109
      %p111 = scmp.ne.s32.totalorder %s97, %s98
      %p112 = scmp.eq.s32.totalorder %s26, 7
      %p113 = por %p111, %p112
      %p115 = scmp.ne.s32.totalorder %s98, %s114
      %p116 = scmp.eq.s32.totalorder %s26, 0
      %p117 = por %p115, %p116
      %s118 = ssub.s32 %s28, %s35
      %p119 = scmp.eq.s32.totalorder %s118, 0
      %s121 = sadd.s32 %s120, 1
      %s122 = scalar_select %p119, %s120, %s121
      %p125 = pneg %p119
      %p126 = scmp.eq.s32.totalorder %s20, 7
      %p127 = por %p125, %p126
      %p128 = scmp.ne.s32.totalorder %s120, %s123
      %p129 = scmp.eq.s32.totalorder %s20, 0
      %p130 = por %p128, %p129
      %p131 = scmp.ne.s32.totalorder %s120, %s123
      %p132 = scmp.eq.s32.totalorder %s25, 7
      %p133 = por %p131, %p132
      %p134 = scmp.ne.s32.totalorder %s123, %s124
      %p135 = scmp.eq.s32.totalorder %s25, 0
      %p136 = por %p134, %p135
      %p137 = scmp.ne.s32.totalorder %s123, %s124
      %p138 = scmp.eq.s32.totalorder %s26, 7
      %p139 = por %p137, %p138
      %p141 = scmp.ne.s32.totalorder %s124, %s140
      %p142 = scmp.eq.s32.totalorder %s26, 0
      %p143 = por %p141, %p142
      %s144 = ssub.s32 %s28, %s35
      %p145 = scmp.eq.s32.totalorder %s144, 0
      %s147 = sadd.s32 %s146, 1
      %s148 = scalar_select %p145, %s146, %s147
      %p151 = pneg %p145
      %p152 = scmp.eq.s32.totalorder %s20, 7
      %p153 = por %p151, %p152
      %p154 = scmp.ne.s32.totalorder %s146, %s149
      %p155 = scmp.eq.s32.totalorder %s20, 0
      %p156 = por %p154, %p155
      %p157 = scmp.ne.s32.totalorder %s146, %s149
      %p158 = scmp.eq.s32.totalorder %s25, 7
      %p159 = por %p157, %p158
      %p160 = scmp.ne.s32.totalorder %s149, %s150
      %p161 = scmp.eq.s32.totalorder %s25, 0
      %p162 = por %p160, %p161
      %p163 = scmp.ne.s32.totalorder %s149, %s150
      %p164 = scmp.eq.s32.totalorder %s26, 7
      %p165 = por %p163, %p164
      %p167 = scmp.ne.s32.totalorder %s150, %s166
      %p168 = scmp.eq.s32.totalorder %s26, 0
      %p169 = por %p167, %p168
      %s170 = ssub.s32 %s28, %s35
      %p171 = scmp.eq.s32.totalorder %s170, 0
      %s173 = sadd.s32 %s172, 1
      %s174 = scalar_select %p171, %s172, %s173
      %p177 = pneg %p171
      %p178 = scmp.eq.s32.totalorder %s20, 7
      %p179 = por %p177, %p178
      %p180 = scmp.ne.s32.totalorder %s172, %s175
      %p181 = scmp.eq.s32.totalorder %s20, 0
      %p182 = por %p180, %p181
      %p183 = scmp.ne.s32.totalorder %s172, %s175
      %p184 = scmp.eq.s32.totalorder %s25, 7
      %p185 = por %p183, %p184
      %p186 = scmp.ne.s32.totalorder %s175, %s176
      %p187 = scmp.eq.s32.totalorder %s25, 0
      %p188 = por %p186, %p187
      %p189 = scmp.ne.s32.totalorder %s175, %s176
      %p190 = scmp.eq.s32.totalorder %s26, 7
      %p191 = por %p189, %p190
      %p193 = scmp.ne.s32.totalorder %s176, %s192
      %p194 = scmp.eq.s32.totalorder %s26, 0
      %p195 = por %p193, %p194
      %s196 = ssub.s32 %s28, %s35
      %p197 = scmp.eq.s32.totalorder %s196, 0
      %s199 = sadd.s32 %s198, 1
      %s200 = scalar_select %p197, %s198, %s199
      %p203 = pneg %p197
      %p204 = scmp.eq.s32.totalorder %s20, 7
      %p205 = por %p203, %p204
      %p206 = scmp.ne.s32.totalorder %s198, %s201
      %p207 = scmp.eq.s32.totalorder %s20, 0
      %p208 = por %p206, %p207
      %p209 = scmp.ne.s32.totalorder %s198, %s201
      %p210 = scmp.eq.s32.totalorder %s25, 7
      %p211 = por %p209, %p210
      %p212 = scmp.ne.s32.totalorder %s201, %s202
      %p213 = scmp.eq.s32.totalorder %s25, 0
      %p214 = por %p212, %p213
      %p215 = scmp.ne.s32.totalorder %s201, %s202
      %p216 = scmp.eq.s32.totalorder %s26, 7
      %p217 = por %p215, %p216
      %p219 = scmp.ne.s32.totalorder %s202, %s218
      %p220 = scmp.eq.s32.totalorder %s26, 0
      %p221 = por %p219, %p220
      %s222 = ssub.s32 %s28, %s35
      %p223 = scmp.eq.s32.totalorder %s222, 0
      %s225 = sadd.s32 %s224, 1
      %s226 = scalar_select %p223, %s224, %s225
      %p229 = pneg %p223
      %p230 = scmp.eq.s32.totalorder %s20, 7
      %p231 = por %p229, %p230
      %p232 = scmp.ne.s32.totalorder %s224, %s227
      %p233 = scmp.eq.s32.totalorder %s20, 0
      %p234 = por %p232, %p233
      %p235 = scmp.ne.s32.totalorder %s224, %s227
      %p236 = scmp.eq.s32.totalorder %s25, 7
      %p237 = por %p235, %p236
      %p238 = scmp.ne.s32.totalorder %s227, %s228
      %p239 = scmp.eq.s32.totalorder %s25, 0
      %p240 = por %p238, %p239
      %p241 = scmp.ne.s32.totalorder %s227, %s228
      %p242 = scmp.eq.s32.totalorder %s26, 7
      %p243 = por %p241, %p242
      %p245 = scmp.ne.s32.totalorder %s228, %s244
      %p246 = scmp.eq.s32.totalorder %s26, 0
      %p247 = por %p245, %p246
      %s248 = ssub.s32 %s28, %s35
      %p249 = scmp.eq.s32.totalorder %s248, 0
      %s251 = sadd.s32 %s250, 1
      %s252 = scalar_select %p249, %s250, %s251
      %p255 = pneg %p249
      %p256 = scmp.eq.s32.totalorder %s20, 7
      %p257 = por %p255, %p256
      %p258 = scmp.ne.s32.totalorder %s250, %s253
      %p259 = scmp.eq.s32.totalorder %s20, 0
      %p260 = por %p258, %p259
      %p261 = scmp.ne.s32.totalorder %s250, %s253
      %p262 = scmp.eq.s32.totalorder %s25, 7
      %p263 = por %p261, %p262
      %p264 = scmp.ne.s32.totalorder %s253, %s254
      %p265 = scmp.eq.s32.totalorder %s25, 0
      %p266 = por %p264, %p265
      %p267 = scmp.ne.s32.totalorder %s253, %s254
      %p268 = scmp.eq.s32.totalorder %s26, 7
      %p269 = por %p267, %p268
      %p271 = scmp.ne.s32.totalorder %s254, %s270
      %p272 = scmp.eq.s32.totalorder %s26, 0
      %p273 = por %p271, %p272
      %s275 = sadd.s32 %s274, 1
      %p278 = scmp.eq.s32.totalorder %s20, 7
      %p279 = scmp.ne.s32.totalorder %s274, %s276
      %p280 = scmp.eq.s32.totalorder %s20, 0
      %p281 = por %p279, %p280
      %p282 = scmp.ne.s32.totalorder %s274, %s276
      %p283 = scmp.eq.s32.totalorder %s25, 7
      %p284 = por %p282, %p283
      %p285 = scmp.ne.s32.totalorder %s276, %s277
      %p286 = scmp.eq.s32.totalorder %s25, 0
      %p287 = por %p285, %p286
      %p288 = scmp.ne.s32.totalorder %s276, %s277
      %p289 = scmp.eq.s32.totalorder %s26, 7
      %p290 = por %p288, %p289
      %p292 = scmp.ne.s32.totalorder %s277, %s291
      %p293 = scmp.eq.s32.totalorder %s26, 0
      %p294 = por %p292, %p293
      %s296 = sadd.s32 %s295, 1
      %p299 = scmp.eq.s32.totalorder %s20, 7
      %p300 = scmp.ne.s32.totalorder %s295, %s297
      %p301 = scmp.eq.s32.totalorder %s20, 0
      %p302 = por %p300, %p301
      %p303 = scmp.ne.s32.totalorder %s295, %s297
      %p304 = scmp.eq.s32.totalorder %s25, 7
      %p305 = por %p303, %p304
      %p306 = scmp.ne.s32.totalorder %s297, %s298
      %p307 = scmp.eq.s32.totalorder %s25, 0
      %p308 = por %p306, %p307
      %p309 = scmp.ne.s32.totalorder %s297, %s298
      %p310 = scmp.eq.s32.totalorder %s26, 7
      %p311 = por %p309, %p310
      %p313 = scmp.ne.s32.totalorder %s298, %s312
      %p314 = scmp.eq.s32.totalorder %s26, 0
      %p315 = por %p313, %p314
      %s316 = ssub.s32 %s27, %s39
      %p317 = scmp.eq.s32.totalorder %s316, 0
      %s319 = sadd.s32 %s318, 1
      %s320 = scalar_select %p317, %s318, %s319
      %p323 = pneg %p317
      %p324 = scmp.eq.s32.totalorder %s20, 7
      %p325 = por %p323, %p324
      %p326 = scmp.ne.s32.totalorder %s318, %s321
      %p327 = scmp.eq.s32.totalorder %s20, 0
      %p328 = por %p326, %p327
      %p329 = scmp.ne.s32.totalorder %s318, %s321
      %p330 = scmp.eq.s32.totalorder %s25, 7
      %p331 = por %p329, %p330
      %p332 = scmp.ne.s32.totalorder %s321, %s322
      %p333 = scmp.eq.s32.totalorder %s25, 0
      %p334 = por %p332, %p333
      %p335 = scmp.ne.s32.totalorder %s321, %s322
      %p336 = scmp.eq.s32.totalorder %s26, 7
      %p337 = por %p335, %p336
      %p339 = scmp.ne.s32.totalorder %s322, %s338
      %p340 = scmp.eq.s32.totalorder %s26, 0
      %p341 = por %p339, %p340
      %p342 = scmp.le.s32.totalorder 1, %s20
      %p343 = scmp.lt.s32.totalorder %s20, 9
      %p344 = pnand %p342, %p343
      %p345 = pneg %p344
      // Predicated region
      $region9: #{tpu_custom_call.1} parent=5 // pred_check
        _
      $region10: #{tpu_custom_call.1} parent=5 // pred_check_branch
        %347 = sbr.rel (%p344) target = $region12
      $region11: #{tpu_custom_call.1} parent=5 // pred_region
        %s348 = ssub.s32 %s20, 1
        // Predicated region
        $region13: #{tpu_custom_call.1} parent=11 // pred_check
          %p349 = pneg %p287
        $region14: #{tpu_custom_call.1} parent=11 // pred_check_branch
          %351 = sbr.rel (%p349) target = $region16
        $region15: #{tpu_custom_call.1} parent=11 // pred_region
          _
        $region16: #{tpu_custom_call.1} parent=11 // pred_fallthru
          _
        // Predicated region
        $region17: #{tpu_custom_call.1} parent=11 // pred_check
          %p352 = pneg %p308
        $region18: #{tpu_custom_call.1} parent=11 // pred_check_branch
          %354 = sbr.rel (%p352) target = $region20
        $region19: #{tpu_custom_call.1} parent=11 // pred_region
          _
        $region20: #{tpu_custom_call.1} parent=11 // pred_fallthru
          _
      $region12: #{tpu_custom_call.1} parent=5 // pred_fallthru
        _
      %p355 = scmp.lt.s32.totalorder %s20, 8
      // Predicated region
      $region21: #{tpu_custom_call.1} parent=5 // pred_check
        %p356 = pneg %p355
      $region22: #{tpu_custom_call.1} parent=5 // pred_check_branch
        %358 = sbr.rel (%p356) target = $region24
      $region23: #{tpu_custom_call.1} parent=5 // pred_region
        // Predicated region
        $region25: #{tpu_custom_call.1} parent=23 // pred_check
          %p359 = pneg %p52
        $region26: #{tpu_custom_call.1} parent=23 // pred_check_branch
          %361 = sbr.rel (%p359) target = $region28
        $region27: #{tpu_custom_call.1} parent=23 // pred_region
          %p362 = scmp.lt.s32.totalorder %s27, 1
          %s363 = scalar_select %p362, %s27, 1
          %s364 = smul.addr %s363, 8
          %s365 = scalar_lea.vmem %s0, %s364
        $region28: #{tpu_custom_call.1} parent=23 // pred_fallthru
          _
        // Predicated region
        $region29: #{tpu_custom_call.1} parent=23 // pred_check
          %p366 = pneg %p78
        $region30: #{tpu_custom_call.1} parent=23 // pred_check_branch
          %368 = sbr.rel (%p366) target = $region32
        $region31: #{tpu_custom_call.1} parent=23 // pred_region
          %p369 = scmp.lt.s32.totalorder %s27, 1
          %s370 = scalar_select %p369, %s27, 1
          %s371 = smul.addr %s370, 8
          %s372 = scalar_lea.vmem %s1, %s371
        $region32: #{tpu_custom_call.1} parent=23 // pred_fallthru
          _
        // Predicated region
        $region33: #{tpu_custom_call.1} parent=23 // pred_check
          %p373 = pneg %p104
        $region34: #{tpu_custom_call.1} parent=23 // pred_check_branch
          %375 = sbr.rel (%p373) target = $region36
        $region35: #{tpu_custom_call.1} parent=23 // pred_region
          %p376 = scmp.lt.s32.totalorder %s28, 3
          %s377 = scalar_select %p376, %s28, 3
          %s378 = smul.addr %s377, 4
          %s379 = smul.addr %s378, 8
          %s380 = scalar_lea.vmem %s2, %s379
        $region36: #{tpu_custom_call.1} parent=23 // pred_fallthru
          _
        // Predicated region
        $region37: #{tpu_custom_call.1} parent=23 // pred_check
          %p381 = pneg %p130
        $region38: #{tpu_custom_call.1} parent=23 // pred_check_branch
          %383 = sbr.rel (%p381) target = $region40
        $region39: #{tpu_custom_call.1} parent=23 // pred_region
          %p384 = scmp.lt.s32.totalorder %s28, 3
          %s385 = scalar_select %p384, %s28, 3
          %s386 = scalar_lea.vmem %s3, %s385
        $region40: #{tpu_custom_call.1} parent=23 // pred_fallthru
          _
        // Predicated region
        $region41: #{tpu_custom_call.1} parent=23 // pred_check
          %p387 = pneg %p156
        $region42: #{tpu_custom_call.1} parent=23 // pred_check_branch
          %389 = sbr.rel (%p387) target = $region44
        $region43: #{tpu_custom_call.1} parent=23 // pred_region
          %p390 = scmp.lt.s32.totalorder %s28, 3
          %s391 = scalar_select %p390, %s28, 3
          %s392 = smul.addr %s391, 4
          %s393 = smul.addr %s392, 8
          %s394 = scalar_lea.vmem %s4, %s393
        $region44: #{tpu_custom_call.1} parent=23 // pred_fallthru
          _
        // Predicated region
        $region45: #{tpu_custom_call.1} parent=23 // pred_check
          %p395 = pneg %p182
        $region46: #{tpu_custom_call.1} parent=23 // pred_check_branch
          %397 = sbr.rel (%p395) target = $region48
        $region47: #{tpu_custom_call.1} parent=23 // pred_region
          %p398 = scmp.lt.s32.totalorder %s28, 3
          %s399 = scalar_select %p398, %s28, 3
          %s400 = scalar_lea.vmem %s5, %s399
        $region48: #{tpu_custom_call.1} parent=23 // pred_fallthru
          _
        // Predicated region
        $region49: #{tpu_custom_call.1} parent=23 // pred_check
          %p401 = pneg %p208
        $region50: #{tpu_custom_call.1} parent=23 // pred_check_branch
          %403 = sbr.rel (%p401) target = $region52
        $region51: #{tpu_custom_call.1} parent=23 // pred_region
          %p404 = scmp.lt.s32.totalorder %s28, 3
          %s405 = scalar_select %p404, %s28, 3
          %s406 = smul.addr %s405, 4
          %s407 = smul.addr %s406, 8
          %s408 = scalar_lea.vmem %s6, %s407
        $region52: #{tpu_custom_call.1} parent=23 // pred_fallthru
          _
        // Predicated region
        $region53: #{tpu_custom_call.1} parent=23 // pred_check
          %p409 = pneg %p234
        $region54: #{tpu_custom_call.1} parent=23 // pred_check_branch
          %411 = sbr.rel (%p409) target = $region56
        $region55: #{tpu_custom_call.1} parent=23 // pred_region
          %p412 = scmp.lt.s32.totalorder %s28, 3
          %s413 = scalar_select %p412, %s28, 3
          %s414 = scalar_lea.vmem %s7, %s413
        $region56: #{tpu_custom_call.1} parent=23 // pred_fallthru
          _
        // Predicated region
        $region57: #{tpu_custom_call.1} parent=23 // pred_check
          %p415 = pneg %p260
        $region58: #{tpu_custom_call.1} parent=23 // pred_check_branch
          %417 = sbr.rel (%p415) target = $region60
        $region59: #{tpu_custom_call.1} parent=23 // pred_region
          %p418 = scmp.lt.s32.totalorder %s28, 3
          %s419 = scalar_select %p418, %s28, 3
          %s420 = smul.addr %s419, 8
          %s421 = scalar_lea.vmem %s8, %s420
        $region60: #{tpu_custom_call.1} parent=23 // pred_fallthru
          _
      $region24: #{tpu_custom_call.1} parent=5 // pred_fallthru
        _
      %p422 = scmp.le.s32.totalorder 1, %s20
      %p423 = scmp.lt.s32.totalorder %s20, 9
      %p424 = pnand %p422, %p423
      %p425 = pneg %p424
      // Predicated region
      $region61: #{tpu_custom_call.1} parent=5 // pred_check
        _
      $region62: #{tpu_custom_call.1} parent=5 // pred_check_branch
        %427 = sbr.rel (%p424) target = $region64
      $region63: #{tpu_custom_call.1} parent=5 // pred_region
        %s428 = ssub.s32 %s20, 1
        %p429 = scmp.lt.s32.totalorder %s29, 1
        %s430 = scalar_select %p429, %s29, 1
        %s431 = smul.addr %s430, 8
        %s432 = scalar_lea.vmem %s0, %s431
        %p433 = pneg %p58
        %p434 = pneg %p55
        %p435 = scmp.lt.s32.totalorder %s29, 1
        %s436 = scalar_select %p435, %s29, 1
        %s437 = smul.addr %s436, 8
        %s438 = scalar_lea.vmem %s1, %s437
        %p439 = pneg %p84
        %p440 = pneg %p81
        %p441 = scmp.lt.s32.totalorder %s30, 3
        %s442 = scalar_select %p441, %s30, 3
        %s443 = smul.addr %s442, 4
        %s444 = smul.addr %s443, 8
        %s445 = scalar_lea.vmem %s2, %s444
        %p446 = pneg %p110
        %p447 = pneg %p107
        %p448 = scmp.lt.s32.totalorder %s30, 3
        %s449 = scalar_select %p448, %s30, 3
        %s450 = scalar_lea.vmem %s3, %s449
        %p451 = pneg %p136
        %p452 = pneg %p133
        %p453 = scmp.lt.s32.totalorder %s30, 3
        %s454 = scalar_select %p453, %s30, 3
        %s455 = smul.addr %s454, 4
        %s456 = smul.addr %s455, 8
        %s457 = scalar_lea.vmem %s4, %s456
        %p458 = pneg %p162
        %p459 = pneg %p159
        %p460 = scmp.lt.s32.totalorder %s30, 3
        %s461 = scalar_select %p460, %s30, 3
        %s462 = scalar_lea.vmem %s5, %s461
        %p463 = pneg %p188
        %p464 = pneg %p185
        %p465 = scmp.lt.s32.totalorder %s30, 3
        %s466 = scalar_select %p465, %s30, 3
        %s467 = smul.addr %s466, 4
        %s468 = smul.addr %s467, 8
        %s469 = scalar_lea.vmem %s6, %s468
        %p470 = pneg %p214
        %p471 = pneg %p211
        %p472 = scmp.lt.s32.totalorder %s30, 3
        %s473 = scalar_select %p472, %s30, 3
        %s474 = scalar_lea.vmem %s7, %s473
        %p475 = pneg %p240
        %p476 = pneg %p237
        %p477 = scmp.lt.s32.totalorder %s30, 3
        %s478 = scalar_select %p477, %s30, 3
        %s479 = smul.addr %s478, 8
        %s480 = scalar_lea.vmem %s8, %s479
        %p481 = pneg %p266
        %p482 = pneg %p263
        %p483 = pneg %p287
        %p484 = pneg %p284
        %p485 = pneg %p308
        %p486 = pneg %p305
        %p487 = pneg %p334
        %p488 = pneg %p331
        %s489 = sand.u32 %s321, 1
        %s490 = scalar_lea.sflag [#allocation4], %s489
        %s491 = sand.u32 %s321, 1
        %s492 = smul.addr %s491, 8
        %s493 = scalar_lea.vmem [#allocation3], %s492
        %p494 = scmp.lt.s32.totalorder %s29, 1
        %s495 = scalar_select %p494, %s29, 1
        %s496 = smul.addr %s495, 8
        %s497 = scalar_lea.vmem %s0, %s496
        %p498 = scmp.lt.s32.totalorder %s29, 1
        %s499 = scalar_select %p498, %s29, 1
        %s500 = smul.addr %s499, 8
        %s501 = scalar_lea.vmem %s1, %s500
        %p502 = scmp.lt.s32.totalorder %s30, 3
        %s503 = scalar_select %p502, %s30, 3
        %s504 = smul.addr %s503, 4
        %s505 = smul.addr %s504, 8
        %s506 = scalar_lea.vmem %s2, %s505
        %p507 = scmp.lt.s32.totalorder %s30, 3
        %s508 = scalar_select %p507, %s30, 3
        %s509 = scalar_lea.vmem %s3, %s508
        %p510 = scmp.lt.s32.totalorder %s30, 3
        %s511 = scalar_select %p510, %s30, 3
        %s512 = smul.addr %s511, 4
        %s513 = smul.addr %s512, 8
        %s514 = scalar_lea.vmem %s4, %s513
        %p515 = scmp.lt.s32.totalorder %s30, 3
        %s516 = scalar_select %p515, %s30, 3
        %s517 = scalar_lea.vmem %s5, %s516
        %p518 = scmp.lt.s32.totalorder %s30, 3
        %s519 = scalar_select %p518, %s30, 3
        %s520 = smul.addr %s519, 4
        %s521 = smul.addr %s520, 8
        %s522 = scalar_lea.vmem %s6, %s521
        %p523 = scmp.lt.s32.totalorder %s30, 3
        %s524 = scalar_select %p523, %s30, 3
        %s525 = scalar_lea.vmem %s7, %s524
        %p526 = scmp.lt.s32.totalorder %s30, 3
        %s527 = scalar_select %p526, %s30, 3
        %s528 = smul.addr %s527, 8
        %s529 = scalar_lea.vmem %s8, %s528
        %p530 = scmp.eq.s32.totalorder %s30, 0
        // Predicated region
        $region65: #{tpu_custom_call.1} parent=63 // pred_check
          %p531 = pneg %p530
        $region66: #{tpu_custom_call.1} parent=63 // pred_check_branch
          %533 = sbr.rel (%p531) target = $region68
        $region67: #{tpu_custom_call.1} parent=63 // pred_region
          %vm534 = vcmask 261120
          %535 = vst.msk [vmem:[#allocation2] sm:$0xff] %vm534, 0.0
        $region68: #{tpu_custom_call.1} parent=63 // pred_fallthru
          _
        %v536 = vld [vmem:[%s497] sm:$0xff]
        %v537 = vld [vmem:[%s501] sm:$0xff]
        %v538 = vld [vmem:[%s506] sm:$0xff]
        %v539 = vld [vmem:[%s506 + $0x8] sm:$0xff]
        %v540 = vld [vmem:[%s506 + $0x10] sm:$0xff]
        %v541 = vld [vmem:[%s506 + $0x18] sm:$0xff]
        %v542 = vld [vmem:[%s509] sm:$0x1]
        %v544 = vlaneseq
        %v545 = vshrl.u32 %v544, 7
        %v546 = vsub.s32 0, %v545
        %v547 = vrot.slane %v542, %v546
        %vm549 = vcmask 261120
        %v551 = vsel %vm549, %v536, 0
        %553 = vmatprep.subr.mxu0 0.0
        %554 = vmatpush1.msra.mxu0 %v538
        %555 = vmatprep.subr.mxu0 0.0
        %556 = vmatpush1.msra.mxu0 %v539
        %557 = vmatprep.subr.mxu0 0.0
        %558 = vmatpush1.msra.mxu0 %v540
        %559 = vmatprep.subr.mxu0 0.0
        %560 = vmatpush1.msra.mxu0 %v541
        %561 = vmatprep.subr.mxu0 0.0
        %562 = vmatpush1.msra.mxu0 0.0
        %563 = vmatprep.subr.mxu0 0.0
        %564 = vmatpush1.msra.mxu0 0.0
        %565 = vmatprep.subr.mxu0 0.0
        %566 = vmatpush1.msra.mxu0 0.0
        %567 = vmatprep.subr.mxu0 0.0
        %568 = vmatpush1.msra.mxu0 0.0
        %569 = vmatprep.subr.mxu0 0.0
        %570 = vmatpush1.msra.mxu0 0.0
        %571 = vmatprep.subr.mxu0 0.0
        %572 = vmatpush1.msra.mxu0 0.0
        %573 = vmatprep.subr.mxu0 0.0
        %574 = vmatpush1.msra.mxu0 0.0
        %575 = vmatprep.subr.mxu0 0.0
        %576 = vmatpush1.msra.mxu0 0.0
        %577 = vmatprep.subr.mxu0 0.0
        %578 = vmatpush1.msra.mxu0 0.0
        %579 = vmatprep.subr.mxu0 0.0
        %580 = vmatpush1.msra.mxu0 0.0
        %581 = vmatprep.subr.mxu0 0.0
        %582 = vmatpush1.msra.mxu0 0.0
        %583 = vmatprep.subr.mxu0 0.0
        %584 = vmatpush1.msra.mxu0 0.0
        %585 = vmatprep.subr.mxu0 0.0
        %586 = vmatpush1.msra.mxu0 0.0
        %587 = vmatprep.subr.mxu0 0.0
        %588 = vmatpush1.msra.mxu0 0.0
        %589 = vmatprep.subr.mxu0 0.0
        %590 = vmatpush1.msra.mxu0 0.0
        %591 = vmatprep.subr.mxu0 0.0
        %592 = vmatpush1.msra.mxu0 0.0
        %593 = vmatprep.subr.mxu0 0.0
        %594 = vmatpush1.msra.mxu0 0.0
        %595 = vmatprep.subr.mxu0 0.0
        %596 = vmatpush1.msra.mxu0 0.0
        %597 = vmatprep.subr.mxu0 0.0
        %598 = vmatpush1.msra.mxu0 0.0
        %599 = vmatprep.subr.mxu0 0.0
        %600 = vmatpush1.msra.mxu0 0.0
        %601 = vmatprep.subr.mxu0 0.0
        %602 = vmatpush1.msra.mxu0 0.0
        %603 = vmatprep.subr.mxu0 0.0
        %604 = vmatpush1.msra.mxu0 0.0
        %605 = vmatprep.subr.mxu0 0.0
        %606 = vmatpush1.msra.mxu0 0.0
        %607 = vmatprep.subr.mxu0 0.0
        %608 = vmatpush1.msra.mxu0 0.0
        %609 = vmatprep.subr.mxu0 0.0
        %610 = vmatpush1.msra.mxu0 0.0
        %611 = vmatprep.subr.mxu0 0.0
        %612 = vmatpush1.msra.mxu0 0.0
        %613 = vmatprep.subr.mxu0 0.0
        %614 = vmatpush1.msra.mxu0 0.0
        %615 = vmatprep.subr.mxu0 0.0
        %616 = vmatpush1.msra.mxu0 0.0
        %617 = vmatprep.mubr.f32.mxu0 0.0
        %618 = vmatmul.mubr.f32.gmra.mrb[0].mxu0 %v551
        %v619 = vpop.f32.mrb[0].mxu0
        %v620 = vadd.f32 %v547, %v619
        %v621 = vpop.f32.mrb[0].mxu0
        %622 = vdwg.mxu0
        %v623 = vld [vmem:[%s514] sm:$0xff]
        %v624 = vld [vmem:[%s514 + $0x8] sm:$0xff]
        %v625 = vld [vmem:[%s514 + $0x10] sm:$0xff]
        %v626 = vld [vmem:[%s514 + $0x18] sm:$0xff]
        %v627 = vld [vmem:[%s517] sm:$0x1]
        %v629 = vlaneseq
        %v630 = vshrl.u32 %v629, 7
        %v631 = vsub.s32 0, %v630
        %v632 = vrot.slane %v627, %v631
        %v635 = vsel %vm549, %v537, 0
        %637 = vmatprep.subr.mxu0 0.0
        %638 = vmatpush1.msra.mxu0 %v623
        %639 = vmatprep.subr.mxu0 0.0
        %640 = vmatpush1.msra.mxu0 %v624
        %641 = vmatprep.subr.mxu0 0.0
        %642 = vmatpush1.msra.mxu0 %v625
        %643 = vmatprep.subr.mxu0 0.0
        %644 = vmatpush1.msra.mxu0 %v626
        %645 = vmatprep.subr.mxu0 0.0
        %646 = vmatpush1.msra.mxu0 0.0
        %647 = vmatprep.subr.mxu0 0.0
        %648 = vmatpush1.msra.mxu0 0.0
        %649 = vmatprep.subr.mxu0 0.0
        %650 = vmatpush1.msra.mxu0 0.0
        %651 = vmatprep.subr.mxu0 0.0
        %652 = vmatpush1.msra.mxu0 0.0
        %653 = vmatprep.subr.mxu0 0.0
        %654 = vmatpush1.msra.mxu0 0.0
        %655 = vmatprep.subr.mxu0 0.0
        %656 = vmatpush1.msra.mxu0 0.0
        %657 = vmatprep.subr.mxu0 0.0
        %658 = vmatpush1.msra.mxu0 0.0
        %659 = vmatprep.subr.mxu0 0.0
        %660 = vmatpush1.msra.mxu0 0.0
        %661 = vmatprep.subr.mxu0 0.0
        %662 = vmatpush1.msra.mxu0 0.0
        %663 = vmatprep.subr.mxu0 0.0
        %664 = vmatpush1.msra.mxu0 0.0
        %665 = vmatprep.subr.mxu0 0.0
        %666 = vmatpush1.msra.mxu0 0.0
        %667 = vmatprep.subr.mxu0 0.0
        %668 = vmatpush1.msra.mxu0 0.0
        %669 = vmatprep.subr.mxu0 0.0
        %670 = vmatpush1.msra.mxu0 0.0
        %671 = vmatprep.subr.mxu0 0.0
        %672 = vmatpush1.msra.mxu0 0.0
        %673 = vmatprep.subr.mxu0 0.0
        %674 = vmatpush1.msra.mxu0 0.0
        %675 = vmatprep.subr.mxu0 0.0
        %676 = vmatpush1.msra.mxu0 0.0
        %677 = vmatprep.subr.mxu0 0.0
        %678 = vmatpush1.msra.mxu0 0.0
        %679 = vmatprep.subr.mxu0 0.0
        %680 = vmatpush1.msra.mxu0 0.0
        %681 = vmatprep.subr.mxu0 0.0
        %682 = vmatpush1.msra.mxu0 0.0
        %683 = vmatprep.subr.mxu0 0.0
        %684 = vmatpush1.msra.mxu0 0.0
        %685 = vmatprep.subr.mxu0 0.0
        %686 = vmatpush1.msra.mxu0 0.0
        %687 = vmatprep.subr.mxu0 0.0
        %688 = vmatpush1.msra.mxu0 0.0
        %689 = vmatprep.subr.mxu0 0.0
        %690 = vmatpush1.msra.mxu0 0.0
        %691 = vmatprep.subr.mxu0 0.0
        %692 = vmatpush1.msra.mxu0 0.0
        %693 = vmatprep.subr.mxu0 0.0
        %694 = vmatpush1.msra.mxu0 0.0
        %695 = vmatprep.subr.mxu0 0.0
        %696 = vmatpush1.msra.mxu0 0.0
        %697 = vmatprep.subr.mxu0 0.0
        %698 = vmatpush1.msra.mxu0 0.0
        %699 = vmatprep.subr.mxu0 0.0
        %700 = vmatpush1.msra.mxu0 0.0
        %701 = vmatprep.mubr.f32.mxu0 0.0
        %702 = vmatmul.mubr.f32.gmra.mrb[0].mxu0 %v635
        %v703 = vpop.f32.mrb[0].mxu0
        %v704 = vadd.f32 %v632, %v703
        %v705 = vpop.f32.mrb[0].mxu0
        %706 = vdwg.mxu0
        %v707 = vld [vmem:[%s522] sm:$0xff]
        %v708 = vld [vmem:[%s522 + $0x8] sm:$0xff]
        %v709 = vld [vmem:[%s522 + $0x10] sm:$0xff]
        %v710 = vld [vmem:[%s522 + $0x18] sm:$0xff]
        %v711 = vld [vmem:[%s525] sm:$0x1]
        %v713 = vlaneseq
        %v714 = vshrl.u32 %v713, 7
        %v715 = vsub.s32 0, %v714
        %v716 = vrot.slane %v711, %v715
        %718 = vmatprep.subr.mxu0 0.0
        %719 = vmatpush1.msra.mxu0 %v707
        %720 = vmatprep.subr.mxu0 0.0
        %721 = vmatpush1.msra.mxu0 %v708
        %722 = vmatprep.subr.mxu0 0.0
        %723 = vmatpush1.msra.mxu0 %v709
        %724 = vmatprep.subr.mxu0 0.0
        %725 = vmatpush1.msra.mxu0 %v710
        %726 = vmatprep.subr.mxu0 0.0
        %727 = vmatpush1.msra.mxu0 0.0
        %728 = vmatprep.subr.mxu0 0.0
        %729 = vmatpush1.msra.mxu0 0.0
        %730 = vmatprep.subr.mxu0 0.0
        %731 = vmatpush1.msra.mxu0 0.0
        %732 = vmatprep.subr.mxu0 0.0
        %733 = vmatpush1.msra.mxu0 0.0
        %734 = vmatprep.subr.mxu0 0.0
        %735 = vmatpush1.msra.mxu0 0.0
        %736 = vmatprep.subr.mxu0 0.0
        %737 = vmatpush1.msra.mxu0 0.0
        %738 = vmatprep.subr.mxu0 0.0
        %739 = vmatpush1.msra.mxu0 0.0
        %740 = vmatprep.subr.mxu0 0.0
        %741 = vmatpush1.msra.mxu0 0.0
        %742 = vmatprep.subr.mxu0 0.0
        %743 = vmatpush1.msra.mxu0 0.0
        %744 = vmatprep.subr.mxu0 0.0
        %745 = vmatpush1.msra.mxu0 0.0
        %746 = vmatprep.subr.mxu0 0.0
        %747 = vmatpush1.msra.mxu0 0.0
        %748 = vmatprep.subr.mxu0 0.0
        %749 = vmatpush1.msra.mxu0 0.0
        %750 = vmatprep.subr.mxu0 0.0
        %751 = vmatpush1.msra.mxu0 0.0
        %752 = vmatprep.subr.mxu0 0.0
        %753 = vmatpush1.msra.mxu0 0.0
        %754 = vmatprep.subr.mxu0 0.0
        %755 = vmatpush1.msra.mxu0 0.0
        %756 = vmatprep.subr.mxu0 0.0
        %757 = vmatpush1.msra.mxu0 0.0
        %758 = vmatprep.subr.mxu0 0.0
        %759 = vmatpush1.msra.mxu0 0.0
        %760 = vmatprep.subr.mxu0 0.0
        %761 = vmatpush1.msra.mxu0 0.0
        %762 = vmatprep.subr.mxu0 0.0
        %763 = vmatpush1.msra.mxu0 0.0
        %764 = vmatprep.subr.mxu0 0.0
        %765 = vmatpush1.msra.mxu0 0.0
        %766 = vmatprep.subr.mxu0 0.0
        %767 = vmatpush1.msra.mxu0 0.0
        %768 = vmatprep.subr.mxu0 0.0
        %769 = vmatpush1.msra.mxu0 0.0
        %770 = vmatprep.subr.mxu0 0.0
        %771 = vmatpush1.msra.mxu0 0.0
        %772 = vmatprep.subr.mxu0 0.0
        %773 = vmatpush1.msra.mxu0 0.0
        %774 = vmatprep.subr.mxu0 0.0
        %775 = vmatpush1.msra.mxu0 0.0
        %776 = vmatprep.subr.mxu0 0.0
        %777 = vmatpush1.msra.mxu0 0.0
        %778 = vmatprep.subr.mxu0 0.0
        %779 = vmatpush1.msra.mxu0 0.0
        %780 = vmatprep.subr.mxu0 0.0
        %781 = vmatpush1.msra.mxu0 0.0
        %782 = vmatprep.mubr.f32.mxu0 0.0
        %783 = vmatmul.mubr.f32.gmra.mrb[0].mxu0 %v635
        %v784 = vpop.f32.mrb[0].mxu0
        %v785 = vadd.f32 %v716, %v784
        %v786 = vpop.f32.mrb[0].mxu0
        %787 = vdwg.mxu0
        %v788 = vld [vmem:[%s9] sm:$0xff]
        %v789 = vld [vmem:[%s10] sm:$0xff]
        %v790 = vmul.f32 %v620, %v788
        %792 = vrot.lane.b32.xlu0 %v789, 4
        %v793 = vpop.permute.xlu0 %792
        %v795 = vmul.f32 %v620, %v793
        %797 = vrot.lane.b32.xlu0 %v795, 124
        %v798 = vpop.permute.xlu0 %797
        %v800 = vsub.f32 %v790, %v798
        %802 = vrot.lane.b32.xlu0 %v788, 4
        %v803 = vpop.permute.xlu0 %802
        %v805 = vmul.f32 %v620, %v803
        %v806 = vmul.f32 %v620, %v789
        %808 = vrot.lane.b32.xlu0 %v806, 4
        %v809 = vpop.permute.xlu0 %808
        %v811 = vadd.f32 %v805, %v809
        %vm812 = vcmask 31744
        %v813 = vsel %vm812, %v800, %v811
        %v814 = vmul.f32 %v704, %v788
        %v815 = vmul.f32 %v704, %v793
        %817 = vrot.lane.b32.xlu0 %v815, 124
        %v818 = vpop.permute.xlu0 %817
        %v820 = vsub.f32 %v814, %v818
        %v821 = vmul.f32 %v704, %v803
        %v822 = vmul.f32 %v704, %v789
        %824 = vrot.lane.b32.xlu0 %v822, 4
        %v825 = vpop.permute.xlu0 %824
        %v827 = vadd.f32 %v821, %v825
        %v828 = vsel %vm812, %v820, %v827
        %vm829 = vcmask 64512
        %v831 = vsel %vm829, %v813, 0
        %v834 = vsel %vm829, %v828, 0
        %836 = vmatprep.subr.mxu0 0.0
        %837 = vmatpush1.xpose.msra.mxu0 %v834
        %838 = vmatprep.subr.mxu0 0.0
        %839 = vmatpush1.xpose.msra.mxu0 0.0
        %840 = vmatprep.subr.mxu0 0.0
        %841 = vmatpush1.xpose.msra.mxu0 0.0
        %842 = vmatprep.subr.mxu0 0.0
        %843 = vmatpush1.xpose.msra.mxu0 0.0
        %844 = vmatprep.subr.mxu0 0.0
        %845 = vmatpush1.xpose.msra.mxu0 0.0
        %846 = vmatprep.subr.mxu0 0.0
        %847 = vmatpush1.xpose.msra.mxu0 0.0
        %848 = vmatprep.subr.mxu0 0.0
        %849 = vmatpush1.xpose.msra.mxu0 0.0
        %850 = vmatprep.subr.mxu0 0.0
        %851 = vmatpush1.xpose.msra.mxu0 0.0
        %852 = vmatprep.subr.mxu0 0.0
        %853 = vmatpush1.xpose.msra.mxu0 0.0
        %854 = vmatprep.subr.mxu0 0.0
        %855 = vmatpush1.xpose.msra.mxu0 0.0
        %856 = vmatprep.subr.mxu0 0.0
        %857 = vmatpush1.xpose.msra.mxu0 0.0
        %858 = vmatprep.subr.mxu0 0.0
        %859 = vmatpush1.xpose.msra.mxu0 0.0
        %860 = vmatprep.subr.mxu0 0.0
        %861 = vmatpush1.xpose.msra.mxu0 0.0
        %862 = vmatprep.subr.mxu0 0.0
        %863 = vmatpush1.xpose.msra.mxu0 0.0
        %864 = vmatprep.subr.mxu0 0.0
        %865 = vmatpush1.xpose.msra.mxu0 0.0
        %866 = vmatprep.subr.mxu0 0.0
        %867 = vmatpush1.xpose.msra.mxu0 0.0
        %868 = vmatprep.subr.mxu0 0.0
        %869 = vmatpush1.xpose.msra.mxu0 0.0
        %870 = vmatprep.subr.mxu0 0.0
        %871 = vmatpush1.xpose.msra.mxu0 0.0
        %872 = vmatprep.subr.mxu0 0.0
        %873 = vmatpush1.xpose.msra.mxu0 0.0
        %874 = vmatprep.subr.mxu0 0.0
        %875 = vmatpush1.xpose.msra.mxu0 0.0
        %876 = vmatprep.subr.mxu0 0.0
        %877 = vmatpush1.xpose.msra.mxu0 0.0
        %878 = vmatprep.subr.mxu0 0.0
        %879 = vmatpush1.xpose.msra.mxu0 0.0
        %880 = vmatprep.subr.mxu0 0.0
        %881 = vmatpush1.xpose.msra.mxu0 0.0
        %882 = vmatprep.subr.mxu0 0.0
        %883 = vmatpush1.xpose.msra.mxu0 0.0
        %884 = vmatprep.subr.mxu0 0.0
        %885 = vmatpush1.xpose.msra.mxu0 0.0
        %886 = vmatprep.subr.mxu0 0.0
        %887 = vmatpush1.xpose.msra.mxu0 0.0
        %888 = vmatprep.subr.mxu0 0.0
        %889 = vmatpush1.xpose.msra.mxu0 0.0
        %890 = vmatprep.subr.mxu0 0.0
        %891 = vmatpush1.xpose.msra.mxu0 0.0
        %892 = vmatprep.subr.mxu0 0.0
        %893 = vmatpush1.xpose.msra.mxu0 0.0
        %894 = vmatprep.subr.mxu0 0.0
        %895 = vmatpush1.xpose.msra.mxu0 0.0
        %896 = vmatprep.subr.mxu0 0.0
        %897 = vmatpush1.xpose.msra.mxu0 0.0
        %898 = vmatprep.subr.mxu0 0.0
        %899 = vmatpush1.xpose.msra.mxu0 0.0
        %900 = vmatprep.mubr.f32.mxu0 0.0
        %901 = vmatmul.mubr.f32.gmra.mrb[0].mxu0 %v831
        %v902 = vpop.f32.mrb[0].mxu0
        %v903 = vadd.f32 0.0, %v902
        %v904 = vpop.f32.mrb[0].mxu0
        %905 = vdwg.mxu0
        %v906 = vmul.f32 %v903, 0.35355338
        %v907 = vlaneseq
        %v908 = vshrl.u32 %v907, 7
        %v909 = vlaneseq
        %v910 = vand.u32 %v909, 127
        %v911 = vadd.s32 %v908, 2
        %vm912 = vcmp.le.s32.totalorder %v910, %v911
        %v913 = vsel %vm912, %v906, -1e+30
        %v914 = vsel %vm829, %v913, -inf
        %915 = vmax.xlane.f32.xlu0 %v914
        %v916 = vpop.xlane.xlu0 %915
        %v917 = vsub.f32 %v913, %v916
        %v918 = vmul.f32 %v917, 1.442695
        %v919 = vpow.pop %v918
        %v920 = vsel %vm829, %v919, 0.0
        %921 = vadd.xlane.f32.xlu0 %v920
        %v922 = vpop.xlane.xlu0 %921
        %v923 = vrcp.pop %v922
        %v924 = vmul.f32 %v919, %v923
        %v926 = vsel %vm829, %v924, 0
        %928 = vmatprep.subr.mxu0 0.0
        %929 = vmatpush1.msra.mxu0 %v785
        %930 = vmatprep.subr.mxu0 0.0
        %931 = vmatpush1.msra.mxu0 0.0
        %932 = vmatprep.subr.mxu0 0.0
        %933 = vmatpush1.msra.mxu0 0.0
        %934 = vmatprep.subr.mxu0 0.0
        %935 = vmatpush1.msra.mxu0 0.0
        %936 = vmatprep.subr.mxu0 0.0
        %937 = vmatpush1.msra.mxu0 0.0
        %938 = vmatprep.subr.mxu0 0.0
        %939 = vmatpush1.msra.mxu0 0.0
        %940 = vmatprep.subr.mxu0 0.0
        %941 = vmatpush1.msra.mxu0 0.0
        %942 = vmatprep.subr.mxu0 0.0
        %943 = vmatpush1.msra.mxu0 0.0
        %944 = vmatprep.subr.mxu0 0.0
        %945 = vmatpush1.msra.mxu0 0.0
        %946 = vmatprep.subr.mxu0 0.0
        %947 = vmatpush1.msra.mxu0 0.0
        %948 = vmatprep.subr.mxu0 0.0
        %949 = vmatpush1.msra.mxu0 0.0
        %950 = vmatprep.subr.mxu0 0.0
        %951 = vmatpush1.msra.mxu0 0.0
        %952 = vmatprep.subr.mxu0 0.0
        %953 = vmatpush1.msra.mxu0 0.0
        %954 = vmatprep.subr.mxu0 0.0
        %955 = vmatpush1.msra.mxu0 0.0
        %956 = vmatprep.subr.mxu0 0.0
        %957 = vmatpush1.msra.mxu0 0.0
        %958 = vmatprep.subr.mxu0 0.0
        %959 = vmatpush1.msra.mxu0 0.0
        %960 = vmatprep.subr.mxu0 0.0
        %961 = vmatpush1.msra.mxu0 0.0
        %962 = vmatprep.subr.mxu0 0.0
        %963 = vmatpush1.msra.mxu0 0.0
        %964 = vmatprep.subr.mxu0 0.0
        %965 = vmatpush1.msra.mxu0 0.0
        %966 = vmatprep.subr.mxu0 0.0
        %967 = vmatpush1.msra.mxu0 0.0
        %968 = vmatprep.subr.mxu0 0.0
        %969 = vmatpush1.msra.mxu0 0.0
        %970 = vmatprep.subr.mxu0 0.0
        %971 = vmatpush1.msra.mxu0 0.0
        %972 = vmatprep.subr.mxu0 0.0
        %973 = vmatpush1.msra.mxu0 0.0
        %974 = vmatprep.subr.mxu0 0.0
        %975 = vmatpush1.msra.mxu0 0.0
        %976 = vmatprep.subr.mxu0 0.0
        %977 = vmatpush1.msra.mxu0 0.0
        %978 = vmatprep.subr.mxu0 0.0
        %979 = vmatpush1.msra.mxu0 0.0
        %980 = vmatprep.subr.mxu0 0.0
        %981 = vmatpush1.msra.mxu0 0.0
        %982 = vmatprep.subr.mxu0 0.0
        %983 = vmatpush1.msra.mxu0 0.0
        %984 = vmatprep.subr.mxu0 0.0
        %985 = vmatpush1.msra.mxu0 0.0
        %986 = vmatprep.subr.mxu0 0.0
        %987 = vmatpush1.msra.mxu0 0.0
        %988 = vmatprep.subr.mxu0 0.0
        %989 = vmatpush1.msra.mxu0 0.0
        %990 = vmatprep.subr.mxu0 0.0
        %991 = vmatpush1.msra.mxu0 0.0
        %992 = vmatprep.mubr.f32.mxu0 0.0
        %993 = vmatmul.mubr.f32.gmra.mrb[0].mxu0 %v926
        %v994 = vpop.f32.mrb[0].mxu0
        %v995 = vadd.f32 0.0, %v994
        %v996 = vpop.f32.mrb[0].mxu0
        %997 = vdwg.mxu0
        %v998 = vld [vmem:[#allocation2] sm:$0xff]
        %v999 = vld [vmem:[%s529] sm:$0xff]
        %v1001 = vsel %vm829, %v995, 0
        %1003 = vmatprep.subr.mxu0 0.0
        %1004 = vmatpush1.msra.mxu0 %v999
        %1005 = vmatprep.subr.mxu0 0.0
        %1006 = vmatpush1.msra.mxu0 0.0
        %1007 = vmatprep.subr.mxu0 0.0
        %1008 = vmatpush1.msra.mxu0 0.0
        %1009 = vmatprep.subr.mxu0 0.0
        %1010 = vmatpush1.msra.mxu0 0.0
        %1011 = vmatprep.subr.mxu0 0.0
        %1012 = vmatpush1.msra.mxu0 0.0
        %1013 = vmatprep.subr.mxu0 0.0
        %1014 = vmatpush1.msra.mxu0 0.0
        %1015 = vmatprep.subr.mxu0 0.0
        %1016 = vmatpush1.msra.mxu0 0.0
        %1017 = vmatprep.subr.mxu0 0.0
        %1018 = vmatpush1.msra.mxu0 0.0
        %1019 = vmatprep.subr.mxu0 0.0
        %1020 = vmatpush1.msra.mxu0 0.0
        %1021 = vmatprep.subr.mxu0 0.0
        %1022 = vmatpush1.msra.mxu0 0.0
        %1023 = vmatprep.subr.mxu0 0.0
        %1024 = vmatpush1.msra.mxu0 0.0
        %1025 = vmatprep.subr.mxu0 0.0
        %1026 = vmatpush1.msra.mxu0 0.0
        %1027 = vmatprep.subr.mxu0 0.0
        %1028 = vmatpush1.msra.mxu0 0.0
        %1029 = vmatprep.subr.mxu0 0.0
        %1030 = vmatpush1.msra.mxu0 0.0
        %1031 = vmatprep.subr.mxu0 0.0
        %1032 = vmatpush1.msra.mxu0 0.0
        %1033 = vmatprep.subr.mxu0 0.0
        %1034 = vmatpush1.msra.mxu0 0.0
        %1035 = vmatprep.subr.mxu0 0.0
        %1036 = vmatpush1.msra.mxu0 0.0
        %1037 = vmatprep.subr.mxu0 0.0
        %1038 = vmatpush1.msra.mxu0 0.0
        %1039 = vmatprep.subr.mxu0 0.0
        %1040 = vmatpush1.msra.mxu0 0.0
        %1041 = vmatprep.subr.mxu0 0.0
        %1042 = vmatpush1.msra.mxu0 0.0
        %1043 = vmatprep.subr.mxu0 0.0
        %1044 = vmatpush1.msra.mxu0 0.0
        %1045 = vmatprep.subr.mxu0 0.0
        %1046 = vmatpush1.msra.mxu0 0.0
        %1047 = vmatprep.subr.mxu0 0.0
        %1048 = vmatpush1.msra.mxu0 0.0
        %1049 = vmatprep.subr.mxu0 0.0
        %1050 = vmatpush1.msra.mxu0 0.0
        %1051 = vmatprep.subr.mxu0 0.0
        %1052 = vmatpush1.msra.mxu0 0.0
        %1053 = vmatprep.subr.mxu0 0.0
        %1054 = vmatpush1.msra.mxu0 0.0
        %1055 = vmatprep.subr.mxu0 0.0
        %1056 = vmatpush1.msra.mxu0 0.0
        %1057 = vmatprep.subr.mxu0 0.0
        %1058 = vmatpush1.msra.mxu0 0.0
        %1059 = vmatprep.subr.mxu0 0.0
        %1060 = vmatpush1.msra.mxu0 0.0
        %1061 = vmatprep.subr.mxu0 0.0
        %1062 = vmatpush1.msra.mxu0 0.0
        %1063 = vmatprep.subr.mxu0 0.0
        %1064 = vmatpush1.msra.mxu0 0.0
        %1065 = vmatprep.subr.mxu0 0.0
        %1066 = vmatpush1.msra.mxu0 0.0
        %1067 = vmatprep.mubr.f32.mxu0 0.0
        %1068 = vmatmul.mubr.f32.gmra.mrb[0].mxu0 %v1001
        %v1069 = vpop.f32.mrb[0].mxu0
        %v1070 = vadd.f32 0.0, %v1069
        %v1071 = vpop.f32.mrb[0].mxu0
        %1072 = vdwg.mxu0
        %v1073 = vadd.f32 %v998, %v1070
        %1074 = vst.msk [vmem:[#allocation2] sm:$0xff] %vm549, %v1073
        %p1075 = scmp.eq.s32.totalorder %s30, 3
        // Predicated region
        $region69: #{tpu_custom_call.1} parent=63 // pred_check
          %p1076 = pneg %p1075
        $region70: #{tpu_custom_call.1} parent=63 // pred_check_branch
          %1078 = sbr.rel (%p1076) target = $region72
        $region71: #{tpu_custom_call.1} parent=63 // pred_region
          %v1079 = vld [vmem:[#allocation2] sm:$0xff]
          %1080 = vst.msk [vmem:[%s493] sm:$0xff] %vm549, %v1079
        $region72: #{tpu_custom_call.1} parent=63 // pred_fallthru
          _
        %s1081 = sand.u32 %s321, 1
        %s1082 = scalar_lea.sflag [#allocation4], %s1081
        %s1083 = sand.u32 %s321, 1
        %s1084 = smul.addr %s1083, 8
        %s1085 = scalar_lea.vmem [#allocation3], %s1084
        // Predicated region
        $region73: #{tpu_custom_call.1} parent=63 // pred_check
          %p1086 = pneg %p331
        $region74: #{tpu_custom_call.1} parent=63 // pred_check_branch
          %1088 = sbr.rel (%p1086) target = $region76
        $region75: #{tpu_custom_call.1} parent=63 // pred_region
          %s1090 = ssub.s32 128, 128
          %1091 = vsyncadd %s1082, %s1090
          %s1092 = smul.addr %s29, 128
          %s1093 = scalar_lea.hbm %s11, %s1092
          %s1095 = sshll.u32 %s1085, 4
          %s1096 = int_to_ptr.vmem [resolvable:$true] %s1095
          %1098 = dma.vmem_to_hbm [thread:$0]  %s1096, 128, %s1093, %s1082
        $region76: #{tpu_custom_call.1} parent=63 // pred_fallthru
          _
      $region64: #{tpu_custom_call.1} parent=5 // pred_fallthru
        _
      %p1099 = scmp.le.s32.totalorder 2, %s20
      // Predicated region
      $region77: #{tpu_custom_call.1} parent=5 // pred_check
        %p1100 = pneg %p1099
      $region78: #{tpu_custom_call.1} parent=5 // pred_check_branch
        %1102 = sbr.rel (%p1100) target = $region80
      $region79: #{tpu_custom_call.1} parent=5 // pred_region
        %s1103 = ssub.s32 %s20, 2
        // Predicated region
        $region81: #{tpu_custom_call.1} parent=79 // pred_check
          %p1104 = pneg %p337
        $region82: #{tpu_custom_call.1} parent=79 // pred_check_branch
          %1106 = sbr.rel (%p1104) target = $region84
        $region83: #{tpu_custom_call.1} parent=79 // pred_region
          %s1107 = sand.u32 %s322, 1
          %s1108 = scalar_lea.sflag [#allocation4], %s1107
          %s1109 = sand.u32 %s322, 1
          %s1110 = smul.addr %s1109, 8
          %s1111 = scalar_lea.vmem [#allocation3], %s1110
          %1112 = dma.done %s1108, 128
        $region84: #{tpu_custom_call.1} parent=79 // pred_fallthru
          _
      $region80: #{tpu_custom_call.1} parent=5 // pred_fallthru
        _
    $region6: #{tpu_custom_call.1} parent=1 // loop_footer
      %s24 = sadd.s32 1, %s20
    $region7: #{tpu_custom_call.1} parent=1 // loop_footer_branch
      %19 = sbr.rel target = $region3
    $region8: #{tpu_custom_call.1} parent=1 // loop_exit
      _
    %1113 = vsyncpa [#allocation4], 1
    %s1114 = scalar_lea.sflag [#allocation4], 1
    %1115 = vsyncpa %s1114, 1

</llo_original>
